<compile_context>
chip_gen: v6e
topology: v6e:2x2x1
jax: 0.10.0
libtpu: 0.0.40
codegen_flags: <defaults>
</compile_context>

<pallas_src>
import functools

import jax
import jax.numpy as jnp
from jax.experimental import pallas as pl
from jax.experimental.pallas import tpu as pltpu


def _round_up(x, m):
    return ((x + m - 1) // m) * m


# --------------------------------------------------------------------------
# Kernel: one batch tile of the 3-layer MLP.
# --------------------------------------------------------------------------
def _disc_kernel(compute_dtype,
                 x_ref, w1_ref, b1_ref, w2_ref, b2_ref, w3t_ref, b3_ref,
                 out_ref):
    """x_ref:   [tile_b, in_c]          (already compute_dtype)
    w1_ref:  [in_c, h_pad]           b1_ref: [1, h_pad]   (f32)
    w2_ref:  [h_pad, h_pad]          b2_ref: [1, h_pad]   (f32)
    w3t_ref: [out_c_pad, h_pad]      b3_ref: [out_c_pad, 1] (f32)
    out_ref: [out_c_pad, tile_b]     (batch on lanes -> lane-dense stores)
    """
    x = x_ref[...].astype(compute_dtype)

    h = jnp.dot(x, w1_ref[...], preferred_element_type=jnp.float32)
    h = jnp.maximum(h + b1_ref[...], 0.0)                    # [tile_b, h_pad]

    h = jnp.dot(h.astype(compute_dtype), w2_ref[...],
                preferred_element_type=jnp.float32)
    h = jnp.maximum(h + b2_ref[...], 0.0)                    # [tile_b, h_pad]

    # Final layer in NT form: contract hidden on both operands so the result
    # lands as [out_c_pad, tile_b] (lane-dense even when out_c == 1).
    y = jax.lax.dot_general(
        w3t_ref[...], h.astype(compute_dtype),
        dimension_numbers=(((1,), (1,)), ((), ())),
        preferred_element_type=jnp.float32)
    out_ref[...] = (y + b3_ref[...]).astype(out_ref.dtype)


# --------------------------------------------------------------------------
# Tiling helpers.
# --------------------------------------------------------------------------
_VMEM_BUDGET_BYTES = 24 << 20   # headroom vs v7x's 32 MiB default scoped VMEM


def _choose_tile_b(batch, max_tile=1024, target_steps=4):
    """Lane-aligned (multiple-of-128) near-equal batch tiles.

    Small batches run as one exact full-batch tile.  Otherwise we target at
    least `target_steps` grid steps (>= 2 per TensorCore on v7x) with tiles
    capped at `max_tile`, sized round_up(cdiv(B, n), 128) so tiles stay
    near-equal (no pathological tiny trailing tile for B just past a boundary).
    """
    if batch <= 128:
        return batch
    max_tile = max(128, (max_tile // 128) * 128)
    n_target = max(target_steps, pl.cdiv(batch, max_tile))
    tile = min(max_tile, _round_up(pl.cdiv(batch, n_target), 128))
    if tile >= batch:
        return batch
    return tile


def _fit_tile_to_vmem(tile, in_c, h_pad, out_c_pad, op_bytes):
    """Shrink a 128-aligned tile until the estimated per-step VMEM fits."""
    def est(t):
        x_b = 2 * t * in_c * op_bytes                              # 2x input buf
        w_b = ((in_c * h_pad + h_pad * h_pad + out_c_pad * h_pad) * op_bytes
               + (2 * h_pad + out_c_pad) * 4)                      # Buffered(1)
        o_b = 2 * out_c_pad * t * 4                                # 2x output buf
        act = 2 * t * h_pad * 4                                    # live f32 h
        return x_b + w_b + o_b + act
    while tile > 128 and est(tile) > _VMEM_BUDGET_BYTES:
        tile -= 128
    return tile


# --------------------------------------------------------------------------
# One-time weight preparation (cast / pad / transpose) — cache and reuse.
# --------------------------------------------------------------------------
def prepare_discriminator_params(params, compute_dtype=jnp.bfloat16):
    """Returns (prepared_dict, out_c).  Call once; reuse across forwards."""
    w1, b1 = params["w1"], params["b1"]
    w2, b2 = params["w2"], params["b2"]
    w3, b3 = params["w3"], params["b3"]
    in_c, hidden = w1.shape
    out_c = w3.shape[1]
    assert w2.shape == (hidden, hidden)
    assert w3.shape[0] == hidden

    cd = jnp.dtype(compute_dtype)
    h_pad = _round_up(hidden, 128)        # lane-dense hidden activations
    out_c_pad = _round_up(out_c, 8)       # sublane-aligned transposed out rows

    # Zero-padding keeps semantics: padded hidden units get 0 weight + 0 bias,
    # so relu(0) = 0 and they never contribute downstream.
    w1p = jnp.zeros((in_c, h_pad), cd).at[:, :hidden].set(w1.astype(cd))
    b1p = jnp.zeros((1, h_pad), jnp.float32).at[0, :hidden].set(
        b1.astype(jnp.float32))
    w2p = jnp.zeros((h_pad, h_pad), cd).at[:hidden, :hidden].set(w2.astype(cd))
    b2p = jnp.zeros((1, h_pad), jnp.float32).at[0, :hidden].set(
        b2.astype(jnp.float32))
    w3tp = jnp.zeros((out_c_pad, h_pad), cd).at[:out_c, :hidden].set(
        w3.T.astype(cd))
    b3p = jnp.zeros((out_c_pad, 1), jnp.float32).at[:out_c, 0].set(
        b3.astype(jnp.float32))

    prepared = {"w1": w1p, "b1": b1p, "w2": w2p, "b2": b2p,
                "w3t": w3tp, "b3": b3p}
    return prepared, out_c


# --------------------------------------------------------------------------
# Jitted forward on prepared weights.
# --------------------------------------------------------------------------
@functools.partial(jax.jit,
                   static_argnames=("out_c", "compute_dtype", "max_tile_b"))
def discriminator_apply(x, prepared, *, out_c,
                        compute_dtype=jnp.bfloat16, max_tile_b=1024):
    """x: [B, in_c]; prepared from prepare_discriminator_params.
    Returns lin3(relu(lin2(relu(lin1(x))))) as [B, out_c] (f32)."""
    B, in_c = x.shape
    cd = jnp.dtype(compute_dtype)
    w1, b1 = prepared["w1"], prepared["b1"]
    w2, b2 = prepared["w2"], prepared["b2"]
    w3t, b3 = prepared["w3t"], prepared["b3"]
    h_pad = w1.shape[1]
    out_c_pad = w3t.shape[0]
    assert w1.shape[0] == in_c

    # Cast once in the (jitted) wrapper so the kernel's input DMA moves
    # compute-dtype bytes (half the HBM->VMEM traffic on the bf16 path).
    x = x.astype(cd)

    tile = _choose_tile_b(B, max_tile=max_tile_b)
    if tile % 128 == 0:
        tile = _fit_tile_to_vmem(tile, in_c, h_pad, out_c_pad, cd.itemsize)
    n_tiles = pl.cdiv(B, tile)

    kernel = functools.partial(_disc_kernel, cd)

    flops = 2 * B * (in_c * h_pad + h_pad * h_pad + h_pad * out_c_pad)
    bytes_accessed = (B * in_c * cd.itemsize
                      + sum(int(v.size) * v.dtype.itemsize
                            for v in prepared.values())
                      + out_c_pad * B * 4)
    cost = pl.CostEstimate(flops=int(flops), transcendentals=0,
                           bytes_accessed=int(bytes_accessed))

    # Weights / biases have a constant index_map: fetched once, single buffer.
    once = dict(pipeline_mode=pl.Buffered(1))

    out_t = pl.pallas_call(
        kernel,
        out_shape=jax.ShapeDtypeStruct((out_c_pad, B), jnp.float32),
        grid_spec=pltpu.PrefetchScalarGridSpec(
            num_scalar_prefetch=0,
            grid=(n_tiles,),
            in_specs=[
                pl.BlockSpec((tile, in_c), lambda i: (i, 0)),            # x
                pl.BlockSpec((in_c, h_pad), lambda i: (0, 0), **once),   # w1
                pl.BlockSpec((1, h_pad), lambda i: (0, 0), **once),      # b1
                pl.BlockSpec((h_pad, h_pad), lambda i: (0, 0), **once),  # w2
                pl.BlockSpec((1, h_pad), lambda i: (0, 0), **once),      # b2
                pl.BlockSpec((out_c_pad, h_pad), lambda i: (0, 0), **once),  # w3^T
                pl.BlockSpec((out_c_pad, 1), lambda i: (0, 0), **once),  # b3
            ],
            out_specs=pl.BlockSpec((out_c_pad, tile), lambda i: (0, i)),
        ),
        compiler_params=pltpu.CompilerParams(
            dimension_semantics=("parallel",)),
        cost_estimate=cost,
    )(x, w1, b1, w2, b2, w3t, b3)

    # [out_c_pad, B] -> [B, out_c]; free reshape when out_c == 1.
    return out_t[:out_c].T


def make_discriminator(params, *, compute_dtype=jnp.bfloat16, max_tile_b=1024):
    """Prepare weights once (cast / pad / transpose) and return a jitted
    forward closure — the recommended way to call this repeatedly."""
    prepared, out_c = prepare_discriminator_params(params, compute_dtype)
    prepared = jax.tree_util.tree_map(jnp.asarray, prepared)  # materialize once

    def forward(x):
        return discriminator_apply(x, prepared, out_c=out_c,
                                   compute_dtype=compute_dtype,
                                   max_tile_b=max_tile_b)
    return forward


def discriminator_forward(x, params, *, compute_dtype=jnp.bfloat16,
                          max_tile_b=1024):
    """One-off convenience wrapper (prep is NOT cached across calls)."""
    prepared, out_c = prepare_discriminator_params(params, compute_dtype)
    return discriminator_apply(x, prepared, out_c=out_c,
                               compute_dtype=compute_dtype,
                               max_tile_b=max_tile_b)


# --------------------------------------------------------------------------
# Reference / init helpers.
# --------------------------------------------------------------------------
def init_discriminator_params(key, in_channels, hidden_channels, out_channels):
    """PyTorch-Linear-style init, stored as [in, out] weights / [out] biases."""
    dims = [(in_channels, hidden_channels),
            (hidden_channels, hidden_channels),
            (hidden_channels, out_channels)]
    params = {}
    for idx, (fan_in, fan_out) in enumerate(dims, start=1):
        key, kw, kb = jax.random.split(key, 3)
        bound = 1.0 / (fan_in ** 0.5)
        params[f"w{idx}"] = jax.random.uniform(
            kw, (fan_in, fan_out), jnp.float32, -bound, bound)
        params[f"b{idx}"] = jax.random.uniform(
            kb, (fan_out,), jnp.float32, -bound, bound)
    return params


def discriminator_reference(x, params):
    h = jnp.maximum(x @ params["w1"] + params["b1"], 0.0)
    h = jnp.maximum(h @ params["w2"] + params["b2"], 0.0)
    return h @ params["w3"] + params["b3"]


if __name__ == "__main__":
    key = jax.random.PRNGKey(0)

    # Case 1: small shapes, default bf16 MXU operands + f32 accumulation,
    # weights prepared once via make_discriminator.
    k1, k2, key = jax.random.split(key, 3)
    B, Cin, Ch, Cout = 8, 4, 32, 1
    params = init_discriminator_params(k1, Cin, Ch, Cout)
    x = jax.random.normal(k2, (B, Cin), jnp.float32)

    fwd = make_discriminator(params)                 # bf16 default
    out = jax.block_until_ready(fwd(x))
    ref = discriminator_reference(x, params)
    assert out.shape == (B, Cout)
    assert jnp.allclose(out, ref, atol=5e-2, rtol=5e-2), float(
        jnp.max(jnp.abs(out - ref)))

    # Case 2: same model, f32 compute path, tight tolerance.
    out32 = jax.block_until_ready(
        discriminator_forward(x, params, compute_dtype=jnp.float32))
    assert out32.shape == (B, Cout)
    assert jnp.allclose(out32, ref, atol=1e-3, rtol=1e-3), float(
        jnp.max(jnp.abs(out32 - ref)))

    # Case 3: multi-tile grid (lane-aligned tiles incl. a partial trailing
    # tile), non-128 hidden width (padded to 128 in prep), multi-class output.
    k3, k4 = jax.random.split(key)
    B2, Cin2, Ch2, Cout2 = 192, 16, 48, 3
    params2 = init_discriminator_params(k3, Cin2, Ch2, Cout2)
    x2 = jax.random.normal(k4, (B2, Cin2), jnp.float32)
    out2 = jax.block_until_ready(
        discriminator_forward(x2, params2, compute_dtype=jnp.float32))
    ref2 = discriminator_reference(x2, params2)
    assert out2.shape == (B2, Cout2)
    assert jnp.allclose(out2, ref2, atol=1e-3, rtol=1e-3), float(
        jnp.max(jnp.abs(out2 - ref2)))

    print("KERNEL_OK")
</pallas_src>

<mosaic_0001>
module attributes {stable_mosaic.version = 11 : i64} {
  func.func @_disc_kernel(%arg0: i32, %arg1: memref<8x4xbf16, #tpu.memory_space<vmem>>, %arg2: memref<4x128xbf16, #tpu.memory_space<vmem>>, %arg3: memref<1x128xf32, #tpu.memory_space<vmem>>, %arg4: memref<128x128xbf16, #tpu.memory_space<vmem>>, %arg5: memref<1x128xf32, #tpu.memory_space<vmem>>, %arg6: memref<8x128xbf16, #tpu.memory_space<vmem>>, %arg7: memref<8x1xf32, #tpu.memory_space<vmem>>, %arg8: memref<8x8xf32, #tpu.memory_space<vmem>>) attributes {dimension_semantics = [#tpu.dimension_semantics<parallel>], iteration_bounds = array<i64: 1>, scalar_prefetch = 0 : i64, scratch_operands = 0 : i64, tpu.core_type = #tpu.core_type<tc>, window_params = [{transform_indices = @transform_0, window_bounds = array<i64: 8, 4>}, {pipeline_mode = #tpu.pipeline_mode<synchronous>, transform_indices = @transform_1, window_bounds = array<i64: 4, 128>}, {pipeline_mode = #tpu.pipeline_mode<synchronous>, transform_indices = @transform_2, window_bounds = array<i64: 1, 128>}, {pipeline_mode = #tpu.pipeline_mode<synchronous>, transform_indices = @transform_3, window_bounds = array<i64: 128, 128>}, {pipeline_mode = #tpu.pipeline_mode<synchronous>, transform_indices = @transform_4, window_bounds = array<i64: 1, 128>}, {pipeline_mode = #tpu.pipeline_mode<synchronous>, transform_indices = @transform_5, window_bounds = array<i64: 8, 128>}, {pipeline_mode = #tpu.pipeline_mode<synchronous>, transform_indices = @transform_6, window_bounds = array<i64: 8, 1>}, {transform_indices = @transform_7, window_bounds = array<i64: 8, 8>}]} {
    %c0 = arith.constant 0 : index
    %c0_0 = arith.constant 0 : index
    %0 = vector.load %arg1[%c0, %c0_0] : memref<8x4xbf16, #tpu.memory_space<vmem>>, vector<8x4xbf16>
    %c0_1 = arith.constant 0 : index
    %c0_2 = arith.constant 0 : index
    %1 = vector.load %arg2[%c0_1, %c0_2] : memref<4x128xbf16, #tpu.memory_space<vmem>>, vector<4x128xbf16>
    %cst = arith.constant dense<0.000000e+00> : vector<8x128xf32>
    %2 = tpu.matmul %0, %1, %cst {dimension_numbers = #tpu.dot_dimension_numbers<[1], [0], [0], [1], [0, 0, 1, 1], [], []>} : vector<8x4xbf16>, vector<4x128xbf16>, vector<8x128xf32> -> vector<8x128xf32>
    %c0_3 = arith.constant 0 : index
    %c0_4 = arith.constant 0 : index
    %3 = vector.load %arg3[%c0_3, %c0_4] : memref<1x128xf32, #tpu.memory_space<vmem>>, vector<1x128xf32>
    %4 = vector.broadcast %3 : vector<1x128xf32> to vector<8x128xf32>
    %5 = arith.addf %2, %4 : vector<8x128xf32>
    %cst_5 = arith.constant 0.000000e+00 : f32
    %6 = vector.broadcast %cst_5 : f32 to vector<8x128xf32>
    %7 = arith.maximumf %5, %6 : vector<8x128xf32>
    %8 = arith.truncf %7 : vector<8x128xf32> to vector<8x128xbf16>
    %c0_6 = arith.constant 0 : index
    %c0_7 = arith.constant 0 : index
    %9 = vector.load %arg4[%c0_6, %c0_7] : memref<128x128xbf16, #tpu.memory_space<vmem>>, vector<128x128xbf16>
    %cst_8 = arith.constant dense<0.000000e+00> : vector<8x128xf32>
    %10 = tpu.matmul %8, %9, %cst_8 {dimension_numbers = #tpu.dot_dimension_numbers<[1], [0], [0], [1], [0, 0, 1, 1], [], []>} : vector<8x128xbf16>, vector<128x128xbf16>, vector<8x128xf32> -> vector<8x128xf32>
    %c0_9 = arith.constant 0 : index
    %c0_10 = arith.constant 0 : index
    %11 = vector.load %arg5[%c0_9, %c0_10] : memref<1x128xf32, #tpu.memory_space<vmem>>, vector<1x128xf32>
    %12 = vector.broadcast %11 : vector<1x128xf32> to vector<8x128xf32>
    %13 = arith.addf %10, %12 : vector<8x128xf32>
    %cst_11 = arith.constant 0.000000e+00 : f32
    %14 = vector.broadcast %cst_11 : f32 to vector<8x128xf32>
    %15 = arith.maximumf %13, %14 : vector<8x128xf32>
    %c0_12 = arith.constant 0 : index
    %c0_13 = arith.constant 0 : index
    %16 = vector.load %arg6[%c0_12, %c0_13] : memref<8x128xbf16, #tpu.memory_space<vmem>>, vector<8x128xbf16>
    %17 = arith.truncf %15 : vector<8x128xf32> to vector<8x128xbf16>
    %cst_14 = arith.constant dense<0.000000e+00> : vector<8x8xf32>
    %18 = tpu.matmul %16, %17, %cst_14 {dimension_numbers = #tpu.dot_dimension_numbers<[1], [1], [0], [0], [0, 0, 1, 0], [], []>} : vector<8x128xbf16>, vector<8x128xbf16>, vector<8x8xf32> -> vector<8x8xf32>
    %c0_15 = arith.constant 0 : index
    %c0_16 = arith.constant 0 : index
    %19 = vector.load %arg7[%c0_15, %c0_16] : memref<8x1xf32, #tpu.memory_space<vmem>>, vector<8x1xf32>
    %20 = vector.broadcast %19 : vector<8x1xf32> to vector<8x8xf32>
    %21 = arith.addf %18, %20 : vector<8x8xf32>
    %c0_17 = arith.constant 0 : index
    %c0_18 = arith.constant 0 : index
    %22 = vector.load %arg8[%c0_17, %c0_18] : memref<8x8xf32, #tpu.memory_space<vmem>>, vector<8x8xf32>
    tpu.vector_store %arg8[%c0_17, %c0_18], %21 {strides = array<i32>} : memref<8x8xf32, #tpu.memory_space<vmem>>, vector<8x8xf32>,
    return
  }
  func.func @transform_0(%arg0: i32) -> (i32, i32) {
    %c0_i32 = arith.constant 0 : i32
    %c0_i32_0 = arith.constant 0 : i32
    return %arg0, %c0_i32 : i32, i32
  }
  func.func @transform_1(%arg0: i32) -> (i32, i32) {
    %c0_i32 = arith.constant 0 : i32
    %c0_i32_0 = arith.constant 0 : i32
    %c0_i32_1 = arith.constant 0 : i32
    return %c0_i32, %c0_i32_0 : i32, i32
  }
  func.func @transform_2(%arg0: i32) -> (i32, i32) {
    %c0_i32 = arith.constant 0 : i32
    %c0_i32_0 = arith.constant 0 : i32
    %c0_i32_1 = arith.constant 0 : i32
    return %c0_i32, %c0_i32_0 : i32, i32
  }
  func.func @transform_3(%arg0: i32) -> (i32, i32) {
    %c0_i32 = arith.constant 0 : i32
    %c0_i32_0 = arith.constant 0 : i32
    %c0_i32_1 = arith.constant 0 : i32
    return %c0_i32, %c0_i32_0 : i32, i32
  }
  func.func @transform_4(%arg0: i32) -> (i32, i32) {
    %c0_i32 = arith.constant 0 : i32
    %c0_i32_0 = arith.constant 0 : i32
    %c0_i32_1 = arith.constant 0 : i32
    return %c0_i32, %c0_i32_0 : i32, i32
  }
  func.func @transform_5(%arg0: i32) -> (i32, i32) {
    %c0_i32 = arith.constant 0 : i32
    %c0_i32_0 = arith.constant 0 : i32
    %c0_i32_1 = arith.constant 0 : i32
    return %c0_i32, %c0_i32_0 : i32, i32
  }
  func.func @transform_6(%arg0: i32) -> (i32, i32) {
    %c0_i32 = arith.constant 0 : i32
    %c0_i32_0 = arith.constant 0 : i32
    %c0_i32_1 = arith.constant 0 : i32
    return %c0_i32, %c0_i32_0 : i32, i32
  }
  func.func @transform_7(%arg0: i32) -> (i32, i32) {
    %c0_i32 = arith.constant 0 : i32
    %c0_i32_0 = arith.constant 0 : i32
    return %c0_i32, %arg0 : i32, i32
  }
}

</mosaic_0001>

<llo_original>
// kernel: discriminator_apply.1
$region0: #{discriminator_apply.1}
  #allocation0 [shape = 'u32[]', space=smem, size = 0x4, offset = 0x4, fixed_abs, tag = 'smem constant byte address 0x4 - core index']
  #allocation1 [shape = 'u32[144,128]{1,0:T(1,128)}', space=vmem, size = 0x12000, scoped, tag = 'internal scratch']
  %s0 = inlined_call_operand.vmem [shape: bf16[8,4], index: 0, kind: input, shape index: {}]
  %s1 = inlined_call_operand.vmem [shape: bf16[4,128], index: 1, kind: input, shape index: {}]
  %s2 = inlined_call_operand.vmem [shape: f32[1,128], index: 2, kind: input, shape index: {}]
  %s3 = inlined_call_operand.hbm [shape: bf16[128,128], index: 3, kind: input, shape index: {}]
  %s4 = inlined_call_operand.vmem [shape: f32[1,128], index: 4, kind: input, shape index: {}]
  %s5 = inlined_call_operand.vmem [shape: bf16[8,128], index: 5, kind: input, shape index: {}]
  %s6 = inlined_call_operand.vmem [shape: f32[8,1], index: 6, kind: input, shape index: {}]
  %s7 = inlined_call_operand.vmem [shape: f32[8,8], index: 7, kind: output, shape index: {}]
  %s8 = sld [smem:[#allocation0]]
  $region42: #{discriminator_apply.1} parent=0
    _
  %s10 = ssub.s32 1, %s8
  %s11 = scalar_select 0, %s10, %s8
  $region1: #{discriminator_apply.1} parent=0
    #allocation2 [shape = 'u8[32768]{0}', space=vmem, size = 0x8000, scoped, tag = 'input window, operand 3, single buffered']
    #allocation3 [shape = 's32[1]{0}', space=sflag, size = 0x4, scoped, tag = 'scoped memory for discriminator_apply.1']
    %12 = vsyncpa [#allocation3], 0
    // Predicated region
    $region2: #{discriminator_apply.1} parent=1 // pred_check
      _
    $region3: #{discriminator_apply.1} parent=1 // pred_check_branch
      %14 = sbr.rel (0) target = $region5
    $region4: #{discriminator_apply.1} parent=1 // pred_region
      _
    $region5: #{discriminator_apply.1} parent=1 // pred_fallthru
      _
    // Predicated region
    $region6: #{discriminator_apply.1} parent=1 // pred_check
      _
    $region7: #{discriminator_apply.1} parent=1 // pred_check_branch
      %16 = sbr.rel (0) target = $region9
    $region8: #{discriminator_apply.1} parent=1 // pred_region
      _
    $region9: #{discriminator_apply.1} parent=1 // pred_fallthru
      _
    // Predicated region
    $region10: #{discriminator_apply.1} parent=1 // pred_check
      _
    $region11: #{discriminator_apply.1} parent=1 // pred_check_branch
      %18 = sbr.rel (0) target = $region13
    $region12: #{discriminator_apply.1} parent=1 // pred_region
      _
    $region13: #{discriminator_apply.1} parent=1 // pred_fallthru
      _
    // Predicated region
    $region14: #{discriminator_apply.1} parent=1 // pred_check
      _
    $region15: #{discriminator_apply.1} parent=1 // pred_check_branch
      %20 = sbr.rel (0) target = $region17
    $region16: #{discriminator_apply.1} parent=1 // pred_region
      %s22 = ssub.s32 1024, 1024
      %23 = vsyncadd [#allocation3], %s22
      %s24 = sshll.u32 [#allocation2], 4
      %s25 = int_to_ptr.vmem [resolvable:$true] %s24
      %30 = dma.hbm_to_vmem [thread:$0]  %s3, 1024, %s25, [#allocation3], 64, 64, 4
    $region17: #{discriminator_apply.1} parent=1 // pred_fallthru
      _
    // Predicated region
    $region18: #{discriminator_apply.1} parent=1 // pred_check
      _
    $region19: #{discriminator_apply.1} parent=1 // pred_check_branch
      %32 = sbr.rel (0) target = $region21
    $region20: #{discriminator_apply.1} parent=1 // pred_region
      _
    $region21: #{discriminator_apply.1} parent=1 // pred_fallthru
      _
    // Predicated region
    $region22: #{discriminator_apply.1} parent=1 // pred_check
      _
    $region23: #{discriminator_apply.1} parent=1 // pred_check_branch
      %34 = sbr.rel (0) target = $region25
    $region24: #{discriminator_apply.1} parent=1 // pred_region
      _
    $region25: #{discriminator_apply.1} parent=1 // pred_fallthru
      _
    // Predicated region
    $region26: #{discriminator_apply.1} parent=1 // pred_check
      _
    $region27: #{discriminator_apply.1} parent=1 // pred_check_branch
      %36 = sbr.rel (0) target = $region29
    $region28: #{discriminator_apply.1} parent=1 // pred_region
      _
    $region29: #{discriminator_apply.1} parent=1 // pred_fallthru
      _
    // Predicated region
    $region30: #{discriminator_apply.1} parent=1 // pred_check
      _
    $region31: #{discriminator_apply.1} parent=1 // pred_check_branch
      %38 = sbr.rel (0) target = $region33
    $region32: #{discriminator_apply.1} parent=1 // pred_region
      %39 = dma.done [#allocation3], 1024
    $region33: #{discriminator_apply.1} parent=1 // pred_fallthru
      _
    %v41 = vld [vmem:[%s0] sm:$0xf]
    %v42 = vld [vmem:[%s1] sm:$0x3]
    %v43 = vld [vmem:[%s2] sm:$0x1]
    %v45 = vlaneseq
    %v46 = vshrl.u32 %v45, 7
    %v47 = vsub.s32 0, %v46
    %v48 = vrot.slane %v43, %v47
    %vm50 = vcmask 31744
    %v52 = vsel %vm50, %v41, 0
    %vm54 = vcmask 1041408
    %v56 = vsel %vm54, %v42, 0
    %58 = vmatprep.subr.bf16.mxu0 0
    %59 = vmatpush1.bf16.msra.mxu0 0
    %60 = vmatprep.subr.bf16.mxu0 0
    %61 = vmatpush1.bf16.msra.mxu0 0
    %62 = vmatprep.subr.bf16.mxu0 0
    %63 = vmatpush1.bf16.msra.mxu0 0
    %64 = vmatprep.subr.bf16.mxu0 0
    %65 = vmatpush1.bf16.msra.mxu0 0
    %66 = vmatprep.subr.bf16.mxu0 0
    %67 = vmatpush1.bf16.msra.mxu0 0
    %68 = vmatprep.subr.bf16.mxu0 0
    %69 = vmatpush1.bf16.msra.mxu0 0
    %70 = vmatprep.subr.bf16.mxu0 0
    %71 = vmatpush1.bf16.msra.mxu0 0
    %72 = vmatprep.subr.bf16.mxu0 0
    %73 = vmatpush1.bf16.msra.mxu0 %v56
    %74 = vmatprep.subr.bf16.mxu0 0
    %75 = vmatpush2.bf16.msra.mxu0 0
    %76 = vmatprep.subr.bf16.mxu0 0
    %77 = vmatpush2.bf16.msra.mxu0 0
    %78 = vmatprep.subr.bf16.mxu0 0
    %79 = vmatpush2.bf16.msra.mxu0 0
    %80 = vmatprep.subr.bf16.mxu0 0
    %81 = vmatpush2.bf16.msra.mxu0 0
    %82 = vmatprep.subr.bf16.mxu0 0
    %83 = vmatpush2.bf16.msra.mxu0 0
    %84 = vmatprep.subr.bf16.mxu0 0
    %85 = vmatpush2.bf16.msra.mxu0 0
    %86 = vmatprep.subr.bf16.mxu0 0
    %87 = vmatpush2.bf16.msra.mxu0 0
    %88 = vmatprep.subr.bf16.mxu0 0
    %89 = vmatpush2.bf16.msra.mxu0 0
    %90 = vmatprep.mubr.bf16.mxu0 0
    %91 = vmatmul.mubr.bf16.gmra.mxu0 %v52
    %v92 = vpop.f32.mrf.mxu0
    %v93 = vadd.f32 %v48, %v92
    %v94 = vpop.f32.mrf.mxu0
    %v95 = vpop.f32.mrf.mxu0
    %v96 = vpop.f32.mrf.mxu0
    %97 = vdwg.mxu0
    %v98 = vmax.f32 %v93, 0.0
    %v99 = vpack.c.bf16 %v98, %v98
    %v100 = vld [vmem:[#allocation2] sm:$0xf]
    %v101 = vld [vmem:[#allocation2 + $0x4] sm:$0xf]
    %v102 = vld [vmem:[#allocation2 + $0x8] sm:$0xf]
    %v103 = vld [vmem:[#allocation2 + $0xc] sm:$0xf]
    %v104 = vld [vmem:[#allocation2 + $0x10] sm:$0xf]
    %v105 = vld [vmem:[#allocation2 + $0x14] sm:$0xf]
    %v106 = vld [vmem:[#allocation2 + $0x18] sm:$0xf]
    %v107 = vld [vmem:[#allocation2 + $0x1c] sm:$0xf]
    %v108 = vld [vmem:[#allocation2 + $0x20] sm:$0xf]
    %v109 = vld [vmem:[#allocation2 + $0x24] sm:$0xf]
    %v110 = vld [vmem:[#allocation2 + $0x28] sm:$0xf]
    %v111 = vld [vmem:[#allocation2 + $0x2c] sm:$0xf]
    %v112 = vld [vmem:[#allocation2 + $0x30] sm:$0xf]
    %v113 = vld [vmem:[#allocation2 + $0x34] sm:$0xf]
    %v114 = vld [vmem:[#allocation2 + $0x38] sm:$0xf]
    %v115 = vld [vmem:[#allocation2 + $0x3c] sm:$0xf]
    %v116 = vld [vmem:[%s4] sm:$0x1]
    %v118 = vlaneseq
    %v119 = vshrl.u32 %v118, 7
    %v120 = vsub.s32 0, %v119
    %v121 = vrot.slane %v116, %v120
    %v139 = vunpack.c.l.b16 %v100
    %v140 = vunpack.c.l.b16 %v101
    %v141 = vunpack.c.l.b16 %v102
    %v142 = vunpack.c.l.b16 %v103
    %v143 = vunpack.c.l.b16 %v104
    %v144 = vunpack.c.l.b16 %v105
    %v145 = vunpack.c.l.b16 %v106
    %v146 = vunpack.c.l.b16 %v107
    %v147 = vunpack.c.l.b16 %v108
    %v148 = vunpack.c.l.b16 %v109
    %v149 = vunpack.c.l.b16 %v110
    %v150 = vunpack.c.l.b16 %v111
    %v151 = vunpack.c.l.b16 %v112
    %v152 = vunpack.c.l.b16 %v113
    %v153 = vunpack.c.l.b16 %v114
    %v154 = vunpack.c.l.b16 %v115
    %v155 = vpack.c.b16 %v140, %v139
    %v156 = vpack.c.b16 %v142, %v141
    %v157 = vpack.c.b16 %v144, %v143
    %v158 = vpack.c.b16 %v146, %v145
    %v159 = vpack.c.b16 %v148, %v147
    %v160 = vpack.c.b16 %v150, %v149
    %v161 = vpack.c.b16 %v152, %v151
    %v162 = vpack.c.b16 %v154, %v153
    %171 = vmatprep.subr.bf16.mxu0 0
    %172 = vmatpush1.bf16.msra.mxu0 %v162
    %173 = vmatprep.subr.bf16.mxu0 0
    %174 = vmatpush1.bf16.msra.mxu0 %v161
    %175 = vmatprep.subr.bf16.mxu0 0
    %176 = vmatpush1.bf16.msra.mxu0 %v160
    %177 = vmatprep.subr.bf16.mxu0 0
    %178 = vmatpush1.bf16.msra.mxu0 %v159
    %179 = vmatprep.subr.bf16.mxu0 0
    %180 = vmatpush1.bf16.msra.mxu0 %v158
    %181 = vmatprep.subr.bf16.mxu0 0
    %182 = vmatpush1.bf16.msra.mxu0 %v157
    %183 = vmatprep.subr.bf16.mxu0 0
    %184 = vmatpush1.bf16.msra.mxu0 %v156
    %185 = vmatprep.subr.bf16.mxu0 0
    %186 = vmatpush1.bf16.msra.mxu0 %v155
    %187 = vmatprep.subr.bf16.mxu0 0
    %188 = vmatpush2.bf16.msra.mxu0 0
    %189 = vmatprep.subr.bf16.mxu0 0
    %190 = vmatpush2.bf16.msra.mxu0 0
    %191 = vmatprep.subr.bf16.mxu0 0
    %192 = vmatpush2.bf16.msra.mxu0 0
    %193 = vmatprep.subr.bf16.mxu0 0
    %194 = vmatpush2.bf16.msra.mxu0 0
    %195 = vmatprep.subr.bf16.mxu0 0
    %196 = vmatpush2.bf16.msra.mxu0 0
    %197 = vmatprep.subr.bf16.mxu0 0
    %198 = vmatpush2.bf16.msra.mxu0 0
    %199 = vmatprep.subr.bf16.mxu0 0
    %200 = vmatpush2.bf16.msra.mxu0 0
    %201 = vmatprep.subr.bf16.mxu0 0
    %202 = vmatpush2.bf16.msra.mxu0 0
    %203 = vmatprep.mubr.bf16.mxu0 0
    %204 = vmatmul.mubr.bf16.gmra.mxu0 %v99
    %v205 = vpop.f32.mrf.mxu0
    %v206 = vadd.f32 %v121, %v205
    %v207 = vpop.f32.mrf.mxu0
    %v208 = vpop.f32.mrf.mxu0
    %v209 = vpop.f32.mrf.mxu0
    %210 = vdwg.mxu0
    %v211 = vmax.f32 %v206, 0.0
    %v212 = vld [vmem:[%s5] sm:$0xf]
    %v213 = vpack.c.bf16 %v211, %v211
    %v214 = vld [vmem:[%s6] sm:$0xff]
    %216 = vset.pattern.permute.xlu0 0
    %217 = vperm.xlu0 %216, %v214
    %v218 = vpop.permute.xlu0 %217
    %220 = vmatprep.subr.bf16.mxu0 0
    %221 = vmatpush1.bf16.xpose.msra.mxu0 0
    %222 = vmatprep.subr.bf16.mxu0 0
    %223 = vmatpush1.bf16.xpose.msra.mxu0 0
    %224 = vmatprep.subr.bf16.mxu0 0
    %225 = vmatpush1.bf16.xpose.msra.mxu0 0
    %226 = vmatprep.subr.bf16.mxu0 0
    %227 = vmatpush1.bf16.xpose.msra.mxu0 0
    %228 = vmatprep.subr.bf16.mxu0 0
    %229 = vmatpush1.bf16.xpose.msra.mxu0 0
    %230 = vmatprep.subr.bf16.mxu0 0
    %231 = vmatpush1.bf16.xpose.msra.mxu0 0
    %232 = vmatprep.subr.bf16.mxu0 0
    %233 = vmatpush1.bf16.xpose.msra.mxu0 0
    %234 = vmatprep.subr.bf16.mxu0 0
    %235 = vmatpush1.bf16.xpose.msra.mxu0 %v213
    %236 = vmatprep.subr.bf16.mxu0 0
    %237 = vmatpush2.bf16.xpose.msra.mxu0 0
    %238 = vmatprep.subr.bf16.mxu0 0
    %239 = vmatpush2.bf16.xpose.msra.mxu0 0
    %240 = vmatprep.subr.bf16.mxu0 0
    %241 = vmatpush2.bf16.xpose.msra.mxu0 0
    %242 = vmatprep.subr.bf16.mxu0 0
    %243 = vmatpush2.bf16.xpose.msra.mxu0 0
    %244 = vmatprep.subr.bf16.mxu0 0
    %245 = vmatpush2.bf16.xpose.msra.mxu0 0
    %246 = vmatprep.subr.bf16.mxu0 0
    %247 = vmatpush2.bf16.xpose.msra.mxu0 0
    %248 = vmatprep.subr.bf16.mxu0 0
    %249 = vmatpush2.bf16.xpose.msra.mxu0 0
    %250 = vmatprep.subr.bf16.mxu0 0
    %251 = vmatpush2.bf16.xpose.msra.mxu0 0
    %252 = vmatprep.mubr.bf16.mxu0 0
    %253 = vmatmul.mubr.bf16.gmra.mxu0 %v212
    %v254 = vpop.f32.mrf.mxu0
    %v255 = vadd.f32 %v218, %v254
    %v256 = vpop.f32.mrf.mxu0
    %v257 = vpop.f32.mrf.mxu0
    %v258 = vpop.f32.mrf.mxu0
    %259 = vdwg.mxu0
    %vm260 = vcmask 64512
    %261 = vst.msk [vmem:[%s7] sm:$0xff] %vm260, %v255
    // Predicated region
    $region34: #{discriminator_apply.1} parent=1 // pred_check
      _
    $region35: #{discriminator_apply.1} parent=1 // pred_check_branch
      %263 = sbr.rel (0) target = $region37
    $region36: #{discriminator_apply.1} parent=1 // pred_region
      _
    $region37: #{discriminator_apply.1} parent=1 // pred_fallthru
      _
    // Predicated region
    $region38: #{discriminator_apply.1} parent=1 // pred_check
      _
    $region39: #{discriminator_apply.1} parent=1 // pred_check_branch
      %265 = sbr.rel (0) target = $region41
    $region40: #{discriminator_apply.1} parent=1 // pred_region
      _
    $region41: #{discriminator_apply.1} parent=1 // pred_fallthru
      _
    %266 = vsyncpa [#allocation3], 1

</llo_original>
